<compile_context>
chip_gen: v7x
topology: tpu7x:2x2x1
jax: 0.10.0
libtpu: 0.0.40
codegen_flags: <defaults>
</compile_context>

<pallas_src>
import jax
import jax.numpy as jnp
from jax import lax
from jax.experimental import pallas as pl
from jax.experimental.pallas import tpu as pltpu


def _round_up(x: int, m: int) -> int:
    return ((x + m - 1) // m) * m


# --- device-aware knobs (resolved once at import time) ----------------------
try:
    _DEVICE_KIND = jax.devices()[0].device_kind.lower()
except Exception:  # pragma: no cover - defensive
    _DEVICE_KIND = ""
_HAS_MULTI_TC = "v7" in _DEVICE_KIND          # v7x: 2 TensorCores per chip
_CORE_PARALLEL = getattr(pltpu, "CORE_PARALLEL", None)


def _choose_batch_tile(B: int) -> int:
    """Lane-tile for the batch axis.

    Fewer, fatter grid steps amortize per-step overhead; on v7x we force >= 2
    (even) steps once B >= 256 so CORE_PARALLEL can split the batch across
    both TensorCores.
    """
    b128 = _round_up(max(B, 1), 128)
    max_tm = 2048
    min_steps = 2 if (_HAS_MULTI_TC and b128 >= 256) else 1
    nsteps = max(min_steps, -(-b128 // max_tm))
    if _HAS_MULTI_TC and nsteps > 1:
        nsteps += nsteps % 2                  # balanced split across 2 TCs
    tm = _round_up(-(-b128 // nsteps), 128)
    return min(tm, max_tm)


def _vmem_limit_bytes(tm: int, ds: int, da: int, f1: int, f2: int) -> int:
    """Scoped-VMEM request sized from the real (padded, double-buffered)
    footprint plus headroom, instead of a hard-coded 32 MiB."""
    lane = lambda n: _round_up(max(n, 1), 128)
    sub = lambda n: _round_up(max(n, 1), 8)
    tile = lambda r, c: sub(r) * lane(c) * 4              # f32 VMEM tile bytes
    est = 0
    est += 2 * (tile(tm, ds) + tile(tm, da))              # input tiles (x2 buf)
    est += 2 * (tile(f1, ds) + tile(f1, da) + tile(f1, 1))  # fc1 params
    est += 2 * (tile(f2, f1) + 2 * tile(f2, 1))           # fc2 + q-head params
    est += 2 * tile(1, tm)                                 # output tile
    est += tile(f1, tm) + tile(f2, tm)                     # h1 / h2 temporaries
    # 2x + 4 MiB headroom for compiler temporaries; 16 MiB floor (== v5e
    # default, below v6e/v7x defaults) so we never under-request.
    return min(112 * 1024 * 1024, max(2 * est + (4 << 20), 16 << 20))


def _critic_kernel(s_ref, a_ref, w1s_ref, w1a_ref, b1_ref, w2_ref, b2_ref,
                   wq_ref, bq_ref, out_ref):
    """Batch sits on lanes of every intermediate; inputs arrive untransposed.

    s_ref  : (TM, Ds)  state tile (batch on sublanes)
    a_ref  : (TM, Da)  action tile
    w1s_ref: (F1, Ds)  fc1 weight columns for state features (PyTorch layout)
    w1a_ref: (F1, Da)  fc1 weight columns for action features
    b1_ref : (F1, 1)
    w2_ref : (F2, F1)
    b2_ref : (F2, 1)
    wq_ref : (F2, 1)   q head as a column
    bq_ref : (1, 1)    q head bias (SMEM scalar)
    out_ref: (1, TM)   lane-dense q tile
    """
    contract_last = (((1,), (1,)), ((), ()))   # A(m,k) x B(n,k) -> (m,n)

    # fc1: relu(W1 @ [s,a]^T + b1) -> (F1, TM).  The concat is folded into two
    # dot_generals contracting on the (tiny) feature dim; Mosaic handles the
    # transposed MXU operand, batch lands directly on lanes.
    h1 = lax.dot_general(w1s_ref[...], s_ref[...], contract_last,
                         preferred_element_type=jnp.float32)
    h1 += lax.dot_general(w1a_ref[...], a_ref[...], contract_last,
                          preferred_element_type=jnp.float32)
    h1 = jnp.maximum(h1 + b1_ref[...], 0.0)

    # fc2: relu(W2 @ h1 + b2) -> (F2, TM)  (the only MXU-shaped matmul).
    h2 = jnp.dot(w2_ref[...], h1, preferred_element_type=jnp.float32)
    h2 = jnp.maximum(h2 + b2_ref[...], 0.0)

    # q head (F2 -> 1) on the VPU + sublane reduction; bq added here so the
    # wrapper does no post-processing pass over the output.
    q = jnp.sum(h2 * wq_ref[...], axis=0, keepdims=True) + bq_ref[0, 0]
    out_ref[...] = q.astype(out_ref.dtype)


@jax.jit
def critic_forward(state, action, params):
    """state: (B, input_dims) f32, action: (B, n_actions) f32 -> (B, 1) f32."""
    w1, b1 = params["w1"], params["b1"]
    w2, b2 = params["w2"], params["b2"]
    wq, bq = params["wq"], params["bq"]

    B, ds = state.shape
    da = action.shape[1]
    din = ds + da
    f1, f2 = w1.shape[0], w2.shape[0]

    # Split the merged fc1 weight (O(F1*Din) bytes; in a real deployment this
    # would happen once at parameter-load time).
    w1s, w1a = w1[:, :ds], w1[:, ds:]

    TM = _choose_batch_tile(B)
    b_pad = _round_up(B, TM)
    if b_pad != B:
        state = jnp.pad(state, ((0, b_pad - B), (0, 0)))
        action = jnp.pad(action, ((0, b_pad - B), (0, 0)))
    steps = b_pad // TM

    if _HAS_MULTI_TC and steps >= 2 and _CORE_PARALLEL is not None:
        dim_sem = (_CORE_PARALLEL,)            # split batch steps across 2 TCs
    else:
        dim_sem = ("parallel",)                # single-TC v5e/v6e

    cost = pl.CostEstimate(
        flops=2 * B * (din * f1 + f1 * f2 + f2),
        transcendentals=0,
        bytes_accessed=4 * (B * din + B + din * f1 + f1 + f1 * f2 + f2 + f2 + 1),
    )

    out = pl.pallas_call(
        _critic_kernel,
        out_shape=jax.ShapeDtypeStruct((1, b_pad), jnp.float32),
        grid=(steps,),
        in_specs=[
            pl.BlockSpec((TM, ds), lambda i: (i, 0)),    # state tile (pipelined)
            pl.BlockSpec((TM, da), lambda i: (i, 0)),    # action tile
            pl.BlockSpec((f1, ds), lambda i: (0, 0)),    # W1[:, :ds] (resident)
            pl.BlockSpec((f1, da), lambda i: (0, 0)),    # W1[:, ds:]
            pl.BlockSpec((f1, 1), lambda i: (0, 0)),     # b1
            pl.BlockSpec((f2, f1), lambda i: (0, 0)),    # W2
            pl.BlockSpec((f2, 1), lambda i: (0, 0)),     # b2
            pl.BlockSpec((f2, 1), lambda i: (0, 0)),     # wq
            pl.BlockSpec(memory_space=pltpu.MemorySpace.SMEM),  # bq scalar
        ],
        out_specs=pl.BlockSpec((1, TM), lambda i: (0, i)),
        compiler_params=pltpu.CompilerParams(
            dimension_semantics=dim_sem,
            vmem_limit_bytes=_vmem_limit_bytes(TM, ds, da, f1, f2),
        ),
        cost_estimate=cost,
    )(state, action, w1s, w1a, b1, w2, b2, wq, bq)

    # (1, B_pad) lane-dense slab -> (B, 1).  Pad lanes hold garbage (relu of
    # biases propagated through zero inputs); this slice must remain.
    return out.reshape(b_pad, 1)[:B]


def init_critic_params(key, input_dims, n_actions, fc1_dims, fc2_dims):
    """Deterministic init mimicking nn.Linear default U(-1/sqrt(fan_in), +).

    Weights kept in the native PyTorch (out, in) layout, which is exactly what
    the batch-on-lanes kernel consumes.
    """
    ks = jax.random.split(key, 6)

    def uniform(k, shape, fan_in):
        bound = 1.0 / jnp.sqrt(jnp.float32(fan_in))
        return jax.random.uniform(k, shape, jnp.float32, -bound, bound)

    in1 = input_dims + n_actions
    return {
        "w1": uniform(ks[0], (fc1_dims, in1), in1),        # (out, in)
        "b1": uniform(ks[1], (fc1_dims, 1), in1),          # column bias
        "w2": uniform(ks[2], (fc2_dims, fc1_dims), fc1_dims),
        "b2": uniform(ks[3], (fc2_dims, 1), fc1_dims),
        "wq": uniform(ks[4], (fc2_dims, 1), fc2_dims),     # q head as column
        "bq": uniform(ks[5], (1, 1), fc2_dims),
    }


def _reference_forward(state, action, params):
    """Pure-JAX reference matching the PyTorch module."""
    x = jnp.concatenate([state, action], axis=1)
    h1 = jax.nn.relu(x @ params["w1"].T + params["b1"].T)
    h2 = jax.nn.relu(h1 @ params["w2"].T + params["b2"].T)
    return h2 @ params["wq"] + params["bq"]


if __name__ == "__main__":
    # Small shapes consistent with the module docstring: state (B, 2), action (B, 1).
    batch = 2
    input_dims = 2
    n_actions = 1
    fc1_dims = 32
    fc2_dims = 32

    key = jax.random.PRNGKey(0)
    k_s, k_a, k_p = jax.random.split(key, 3)
    state = jax.random.normal(k_s, (batch, input_dims), jnp.float32)
    action = jax.random.normal(k_a, (batch, n_actions), jnp.float32)
    params = init_critic_params(k_p, input_dims, n_actions, fc1_dims, fc2_dims)

    q = critic_forward(state, action, params)
    q = jax.block_until_ready(q)

    q_ref = _reference_forward(state, action, params)
    assert q.shape == (batch, 1), q.shape
    # Tolerance accounts for the TPU default (bf16-operand) MXU path; pass
    # precision=lax.Precision.HIGHEST in the dots if exact fp32 parity with
    # PyTorch is ever required (at ~3-6x MXU cost).
    assert jnp.allclose(q, q_ref, atol=5e-3, rtol=5e-3), (q, q_ref)

    # TODO(synk): optimizer (Adam) and checkpoint save/load from the PyTorch
    # module are host-side training utilities with no kernel equivalent.
    print("KERNEL_OK")
</pallas_src>

<mosaic_0001>
module attributes {stable_mosaic.version = 11 : i64} {
  func.func @_critic_kernel(%arg0: i32, %arg1: memref<128x2xf32, #tpu.memory_space<vmem>>, %arg2: memref<128x1xf32, #tpu.memory_space<vmem>>, %arg3: memref<32x2xf32, #tpu.memory_space<vmem>>, %arg4: memref<32x1xf32, #tpu.memory_space<vmem>>, %arg5: memref<32x1xf32, #tpu.memory_space<vmem>>, %arg6: memref<32x32xf32, #tpu.memory_space<vmem>>, %arg7: memref<32x1xf32, #tpu.memory_space<vmem>>, %arg8: memref<32x1xf32, #tpu.memory_space<vmem>>, %arg9: memref<1x1xf32, #tpu.memory_space<smem>>, %arg10: memref<1x128xf32, #tpu.memory_space<vmem>>) attributes {dimension_semantics = [#tpu.dimension_semantics<parallel>], iteration_bounds = array<i64: 1>, scalar_prefetch = 0 : i64, scratch_operands = 0 : i64, tpu.core_type = #tpu.core_type<tc>, window_params = [{transform_indices = @transform_0, window_bounds = array<i64: 128, 2>}, {transform_indices = @transform_1, window_bounds = array<i64: 128, 1>}, {pipeline_mode = #tpu.pipeline_mode<synchronous>, transform_indices = @transform_2, window_bounds = array<i64: 32, 2>}, {pipeline_mode = #tpu.pipeline_mode<synchronous>, transform_indices = @transform_3, window_bounds = array<i64: 32, 1>}, {pipeline_mode = #tpu.pipeline_mode<synchronous>, transform_indices = @transform_4, window_bounds = array<i64: 32, 1>}, {pipeline_mode = #tpu.pipeline_mode<synchronous>, transform_indices = @transform_5, window_bounds = array<i64: 32, 32>}, {pipeline_mode = #tpu.pipeline_mode<synchronous>, transform_indices = @transform_6, window_bounds = array<i64: 32, 1>}, {pipeline_mode = #tpu.pipeline_mode<synchronous>, transform_indices = @transform_7, window_bounds = array<i64: 32, 1>}, {transform_indices = @transform_8, window_bounds = array<i64: 1, 1>}, {transform_indices = @transform_9, window_bounds = array<i64: 1, 128>}]} {
    %c0 = arith.constant 0 : index
    %c0_0 = arith.constant 0 : index
    %0 = vector.load %arg3[%c0, %c0_0] : memref<32x2xf32, #tpu.memory_space<vmem>>, vector<32x2xf32>
    %c0_1 = arith.constant 0 : index
    %c0_2 = arith.constant 0 : index
    %1 = vector.load %arg1[%c0_1, %c0_2] : memref<128x2xf32, #tpu.memory_space<vmem>>, vector<128x2xf32>
    %cst = arith.constant dense<0.000000e+00> : vector<32x128xf32>
    %2 = tpu.matmul %0, %1, %cst {dimension_numbers = #tpu.dot_dimension_numbers<[1], [1], [0], [0], [0, 0, 1, 0], [], []>} : vector<32x2xf32>, vector<128x2xf32>, vector<32x128xf32> -> vector<32x128xf32>
    %c0_3 = arith.constant 0 : index
    %c0_4 = arith.constant 0 : index
    %3 = vector.load %arg4[%c0_3, %c0_4] : memref<32x1xf32, #tpu.memory_space<vmem>>, vector<32x1xf32>
    %c0_5 = arith.constant 0 : index
    %c0_6 = arith.constant 0 : index
    %4 = vector.load %arg2[%c0_5, %c0_6] : memref<128x1xf32, #tpu.memory_space<vmem>>, vector<128x1xf32>
    %cst_7 = arith.constant dense<0.000000e+00> : vector<32x128xf32>
    %5 = tpu.matmul %3, %4, %cst_7 {dimension_numbers = #tpu.dot_dimension_numbers<[1], [1], [0], [0], [0, 0, 1, 0], [], []>} : vector<32x1xf32>, vector<128x1xf32>, vector<32x128xf32> -> vector<32x128xf32>
    %6 = arith.addf %2, %5 : vector<32x128xf32>
    %c0_8 = arith.constant 0 : index
    %c0_9 = arith.constant 0 : index
    %7 = vector.load %arg5[%c0_8, %c0_9] : memref<32x1xf32, #tpu.memory_space<vmem>>, vector<32x1xf32>
    %8 = vector.broadcast %7 : vector<32x1xf32> to vector<32x128xf32>
    %9 = arith.addf %6, %8 : vector<32x128xf32>
    %cst_10 = arith.constant 0.000000e+00 : f32
    %10 = vector.broadcast %cst_10 : f32 to vector<32x128xf32>
    %11 = arith.maximumf %9, %10 : vector<32x128xf32>
    %c0_11 = arith.constant 0 : index
    %c0_12 = arith.constant 0 : index
    %12 = vector.load %arg6[%c0_11, %c0_12] : memref<32x32xf32, #tpu.memory_space<vmem>>, vector<32x32xf32>
    %cst_13 = arith.constant dense<0.000000e+00> : vector<32x128xf32>
    %13 = tpu.matmul %12, %11, %cst_13 {dimension_numbers = #tpu.dot_dimension_numbers<[1], [0], [0], [1], [0, 0, 1, 1], [], []>} : vector<32x32xf32>, vector<32x128xf32>, vector<32x128xf32> -> vector<32x128xf32>
    %c0_14 = arith.constant 0 : index
    %c0_15 = arith.constant 0 : index
    %14 = vector.load %arg7[%c0_14, %c0_15] : memref<32x1xf32, #tpu.memory_space<vmem>>, vector<32x1xf32>
    %15 = vector.broadcast %14 : vector<32x1xf32> to vector<32x128xf32>
    %16 = arith.addf %13, %15 : vector<32x128xf32>
    %cst_16 = arith.constant 0.000000e+00 : f32
    %17 = vector.broadcast %cst_16 : f32 to vector<32x128xf32>
    %18 = arith.maximumf %16, %17 : vector<32x128xf32>
    %c0_17 = arith.constant 0 : index
    %c0_18 = arith.constant 0 : index
    %19 = vector.load %arg8[%c0_17, %c0_18] : memref<32x1xf32, #tpu.memory_space<vmem>>, vector<32x1xf32>
    %20 = vector.broadcast %19 : vector<32x1xf32> to vector<32x128xf32>
    %21 = arith.mulf %18, %20 : vector<32x128xf32>
    %cst_19 = arith.constant dense<0.000000e+00> : vector<128xf32>
    %22 = vector.multi_reduction <add>, %21, %cst_19 [0] : vector<32x128xf32> to vector<128xf32>
    %23 = vector.shape_cast %22 : vector<128xf32> to vector<1x128xf32>
    %c0_20 = arith.constant 0 : index
    %c0_21 = arith.constant 0 : index
    %24 = memref.load %arg9[%c0_20, %c0_21] : memref<1x1xf32, #tpu.memory_space<smem>>
    %25 = vector.broadcast %24 : f32 to vector<1x128xf32>
    %26 = arith.addf %23, %25 : vector<1x128xf32>
    %c0_22 = arith.constant 0 : index
    %c0_23 = arith.constant 0 : index
    %27 = vector.load %arg10[%c0_22, %c0_23] : memref<1x128xf32, #tpu.memory_space<vmem>>, vector<1x128xf32>
    tpu.vector_store %arg10[%c0_22, %c0_23], %26 {strides = array<i32>} : memref<1x128xf32, #tpu.memory_space<vmem>>, vector<1x128xf32>,
    return
  }
  func.func @transform_0(%arg0: i32) -> (i32, i32) {
    %c0_i32 = arith.constant 0 : i32
    %c0_i32_0 = arith.constant 0 : i32
    return %arg0, %c0_i32 : i32, i32
  }
  func.func @transform_1(%arg0: i32) -> (i32, i32) {
    %c0_i32 = arith.constant 0 : i32
    %c0_i32_0 = arith.constant 0 : i32
    return %arg0, %c0_i32 : i32, i32
  }
  func.func @transform_2(%arg0: i32) -> (i32, i32) {
    %c0_i32 = arith.constant 0 : i32
    %c0_i32_0 = arith.constant 0 : i32
    %c0_i32_1 = arith.constant 0 : i32
    return %c0_i32, %c0_i32_0 : i32, i32
  }
  func.func @transform_3(%arg0: i32) -> (i32, i32) {
    %c0_i32 = arith.constant 0 : i32
    %c0_i32_0 = arith.constant 0 : i32
    %c0_i32_1 = arith.constant 0 : i32
    return %c0_i32, %c0_i32_0 : i32, i32
  }
  func.func @transform_4(%arg0: i32) -> (i32, i32) {
    %c0_i32 = arith.constant 0 : i32
    %c0_i32_0 = arith.constant 0 : i32
    %c0_i32_1 = arith.constant 0 : i32
    return %c0_i32, %c0_i32_0 : i32, i32
  }
  func.func @transform_5(%arg0: i32) -> (i32, i32) {
    %c0_i32 = arith.constant 0 : i32
    %c0_i32_0 = arith.constant 0 : i32
    %c0_i32_1 = arith.constant 0 : i32
    return %c0_i32, %c0_i32_0 : i32, i32
  }
  func.func @transform_6(%arg0: i32) -> (i32, i32) {
    %c0_i32 = arith.constant 0 : i32
    %c0_i32_0 = arith.constant 0 : i32
    %c0_i32_1 = arith.constant 0 : i32
    return %c0_i32, %c0_i32_0 : i32, i32
  }
  func.func @transform_7(%arg0: i32) -> (i32, i32) {
    %c0_i32 = arith.constant 0 : i32
    %c0_i32_0 = arith.constant 0 : i32
    %c0_i32_1 = arith.constant 0 : i32
    return %c0_i32, %c0_i32_0 : i32, i32
  }
  func.func @transform_8(%arg0: i32) -> (i32, i32) {
    %c0_i32 = arith.constant 0 : i32
    %c0_i32_0 = arith.constant 0 : i32
    %c0_i32_1 = arith.constant 0 : i32
    return %c0_i32, %c0_i32_0 : i32, i32
  }
  func.func @transform_9(%arg0: i32) -> (i32, i32) {
    %c0_i32 = arith.constant 0 : i32
    %c0_i32_0 = arith.constant 0 : i32
    return %c0_i32, %arg0 : i32, i32
  }
}

</mosaic_0001>

<llo_original>
// kernel: critic_forward.1
$region0: #{critic_forward.1}
  #allocation0 [shape = 'u32[]', space=smem, size = 0x4, offset = 0x4, fixed_abs, tag = 'smem constant byte address 0x4 - core index']
  #allocation1 [shape = 'u32[144,128]{1,0:T(1,128)}', space=vmem, size = 0x12000, scoped, tag = 'internal scratch']
  #allocation2 [shape = 'f32[1,1]{1,0:T(1,128)S(6)}', space=smem, size = 0x200, scoped, tag = 'scoped memory for critic_forward.1']
  %s0 = inlined_call_operand.vmem [shape: f32[128,2], index: 0, kind: input, shape index: {}]
  %s1 = inlined_call_operand.vmem [shape: f32[128,1], index: 1, kind: input, shape index: {}]
  %s2 = inlined_call_operand.vmem [shape: f32[32,2], index: 2, kind: input, shape index: {}]
  %s3 = inlined_call_operand.vmem [shape: f32[32,1], index: 3, kind: input, shape index: {}]
  %s4 = inlined_call_operand.vmem [shape: f32[32,1], index: 4, kind: input, shape index: {}]
  %s5 = inlined_call_operand.vmem [shape: f32[32,32], index: 5, kind: input, shape index: {}]
  %s6 = inlined_call_operand.vmem [shape: f32[32,1], index: 6, kind: input, shape index: {}]
  %s7 = inlined_call_operand.vmem [shape: f32[32,1], index: 7, kind: input, shape index: {}]
  %s8 = inlined_call_operand.<no memory space> [shape: f32[1,1], index: 8, kind: input, shape index: {}]
  %s9 = inlined_call_operand.vmem [shape: f32[1,128], index: 9, kind: output, shape index: {}]
  %s10 = sld [smem:[#allocation0]]
  $region46: #{critic_forward.1} parent=0
    _
  %s12 = ssub.s32 1, %s10
  %s13 = scalar_select 0, %s12, %s10
  %14 = sst [smem:[#allocation2]] %s8
  // Predicated region
  $region2: #{critic_forward.1} parent=0 // pred_check
    _
  $region3: #{critic_forward.1} parent=0 // pred_check_branch
    %16 = sbr.rel (0) target = $region5
  $region4: #{critic_forward.1} parent=0 // pred_region
    _
  $region5: #{critic_forward.1} parent=0 // pred_fallthru
    _
  // Predicated region
  $region6: #{critic_forward.1} parent=0 // pred_check
    _
  $region7: #{critic_forward.1} parent=0 // pred_check_branch
    %18 = sbr.rel (0) target = $region9
  $region8: #{critic_forward.1} parent=0 // pred_region
    _
  $region9: #{critic_forward.1} parent=0 // pred_fallthru
    _
  // Predicated region
  $region10: #{critic_forward.1} parent=0 // pred_check
    _
  $region11: #{critic_forward.1} parent=0 // pred_check_branch
    %20 = sbr.rel (0) target = $region13
  $region12: #{critic_forward.1} parent=0 // pred_region
    _
  $region13: #{critic_forward.1} parent=0 // pred_fallthru
    _
  // Predicated region
  $region14: #{critic_forward.1} parent=0 // pred_check
    _
  $region15: #{critic_forward.1} parent=0 // pred_check_branch
    %22 = sbr.rel (0) target = $region17
  $region16: #{critic_forward.1} parent=0 // pred_region
    _
  $region17: #{critic_forward.1} parent=0 // pred_fallthru
    _
  // Predicated region
  $region18: #{critic_forward.1} parent=0 // pred_check
    _
  $region19: #{critic_forward.1} parent=0 // pred_check_branch
    %24 = sbr.rel (0) target = $region21
  $region20: #{critic_forward.1} parent=0 // pred_region
    _
  $region21: #{critic_forward.1} parent=0 // pred_fallthru
    _
  // Predicated region
  $region22: #{critic_forward.1} parent=0 // pred_check
    _
  $region23: #{critic_forward.1} parent=0 // pred_check_branch
    %26 = sbr.rel (0) target = $region25
  $region24: #{critic_forward.1} parent=0 // pred_region
    _
  $region25: #{critic_forward.1} parent=0 // pred_fallthru
    _
  // Predicated region
  $region26: #{critic_forward.1} parent=0 // pred_check
    _
  $region27: #{critic_forward.1} parent=0 // pred_check_branch
    %28 = sbr.rel (0) target = $region29
  $region28: #{critic_forward.1} parent=0 // pred_region
    _
  $region29: #{critic_forward.1} parent=0 // pred_fallthru
    _
  // Predicated region
  $region30: #{critic_forward.1} parent=0 // pred_check
    _
  $region31: #{critic_forward.1} parent=0 // pred_check_branch
    %30 = sbr.rel (0) target = $region33
  $region32: #{critic_forward.1} parent=0 // pred_region
    _
  $region33: #{critic_forward.1} parent=0 // pred_fallthru
    _
  // Predicated region
  $region34: #{critic_forward.1} parent=0 // pred_check
    _
  $region35: #{critic_forward.1} parent=0 // pred_check_branch
    %32 = sbr.rel (0) target = $region37
  $region36: #{critic_forward.1} parent=0 // pred_region
    _
  $region37: #{critic_forward.1} parent=0 // pred_fallthru
    _
  %v33 = vld [vmem:[%s2] sm:$0xff]
  %v34 = vld [vmem:[%s2 + $0x8] sm:$0xff]
  %v35 = vld [vmem:[%s2 + $0x10] sm:$0xff]
  %v36 = vld [vmem:[%s2 + $0x18] sm:$0xff]
  %v37 = vld [vmem:[%s0] sm:$0xff]
  %v38 = vld [vmem:[%s0 + $0x8] sm:$0xff]
  %v39 = vld [vmem:[%s0 + $0x10] sm:$0xff]
  %v40 = vld [vmem:[%s0 + $0x18] sm:$0xff]
  %v41 = vld [vmem:[%s0 + $0x20] sm:$0xff]
  %v42 = vld [vmem:[%s0 + $0x28] sm:$0xff]
  %v43 = vld [vmem:[%s0 + $0x30] sm:$0xff]
  %v44 = vld [vmem:[%s0 + $0x38] sm:$0xff]
  %v45 = vld [vmem:[%s0 + $0x40] sm:$0xff]
  %v46 = vld [vmem:[%s0 + $0x48] sm:$0xff]
  %v47 = vld [vmem:[%s0 + $0x50] sm:$0xff]
  %v48 = vld [vmem:[%s0 + $0x58] sm:$0xff]
  %v49 = vld [vmem:[%s0 + $0x60] sm:$0xff]
  %v50 = vld [vmem:[%s0 + $0x68] sm:$0xff]
  %v51 = vld [vmem:[%s0 + $0x70] sm:$0xff]
  %v52 = vld [vmem:[%s0 + $0x78] sm:$0xff]
  %v53 = vld [vmem:[%s3] sm:$0xff]
  %v54 = vld [vmem:[%s3 + $0x8] sm:$0xff]
  %v55 = vld [vmem:[%s3 + $0x10] sm:$0xff]
  %v56 = vld [vmem:[%s3 + $0x18] sm:$0xff]
  %v57 = vld [vmem:[%s1] sm:$0xff]
  %v58 = vld [vmem:[%s1 + $0x8] sm:$0xff]
  %v59 = vld [vmem:[%s1 + $0x10] sm:$0xff]
  %v60 = vld [vmem:[%s1 + $0x18] sm:$0xff]
  %v61 = vld [vmem:[%s1 + $0x20] sm:$0xff]
  %v62 = vld [vmem:[%s1 + $0x28] sm:$0xff]
  %v63 = vld [vmem:[%s1 + $0x30] sm:$0xff]
  %v64 = vld [vmem:[%s1 + $0x38] sm:$0xff]
  %v65 = vld [vmem:[%s1 + $0x40] sm:$0xff]
  %v66 = vld [vmem:[%s1 + $0x48] sm:$0xff]
  %v67 = vld [vmem:[%s1 + $0x50] sm:$0xff]
  %v68 = vld [vmem:[%s1 + $0x58] sm:$0xff]
  %v69 = vld [vmem:[%s1 + $0x60] sm:$0xff]
  %v70 = vld [vmem:[%s1 + $0x68] sm:$0xff]
  %v71 = vld [vmem:[%s1 + $0x70] sm:$0xff]
  %v72 = vld [vmem:[%s1 + $0x78] sm:$0xff]
  %vm73 = vcmask 7168
  %v75 = vsel %vm73, %v53, 0
  %v78 = vsel %vm73, %v54, 0
  %v81 = vsel %vm73, %v55, 0
  %v84 = vsel %vm73, %v56, 0
  %v87 = vsel %vm73, %v57, 0
  %v90 = vsel %vm73, %v58, 0
  %v93 = vsel %vm73, %v59, 0
  %v96 = vsel %vm73, %v60, 0
  %v99 = vsel %vm73, %v61, 0
  %v102 = vsel %vm73, %v62, 0
  %v105 = vsel %vm73, %v63, 0
  %v108 = vsel %vm73, %v64, 0
  %v111 = vsel %vm73, %v65, 0
  %v114 = vsel %vm73, %v66, 0
  %v117 = vsel %vm73, %v67, 0
  %v120 = vsel %vm73, %v68, 0
  %v123 = vsel %vm73, %v69, 0
  %v126 = vsel %vm73, %v70, 0
  %v129 = vsel %vm73, %v71, 0
  %v132 = vsel %vm73, %v72, 0
  %134 = vmatprep.subr.mxu0 0.0
  %135 = vmatpush1.xpose.msra.mxu0 %v87
  %136 = vmatprep.subr.mxu0 0.0
  %137 = vmatpush1.xpose.msra.mxu0 %v90
  %138 = vmatprep.subr.mxu0 0.0
  %139 = vmatpush1.xpose.msra.mxu0 %v93
  %140 = vmatprep.subr.mxu0 0.0
  %141 = vmatpush1.xpose.msra.mxu0 %v96
  %142 = vmatprep.subr.mxu0 0.0
  %143 = vmatpush1.xpose.msra.mxu0 %v99
  %144 = vmatprep.subr.mxu0 0.0
  %145 = vmatpush1.xpose.msra.mxu0 %v102
  %146 = vmatprep.subr.mxu0 0.0
  %147 = vmatpush1.xpose.msra.mxu0 %v105
  %148 = vmatprep.subr.mxu0 0.0
  %149 = vmatpush1.xpose.msra.mxu0 %v108
  %150 = vmatprep.subr.mxu0 0.0
  %151 = vmatpush1.xpose.msra.mxu0 %v111
  %152 = vmatprep.subr.mxu0 0.0
  %153 = vmatpush1.xpose.msra.mxu0 %v114
  %154 = vmatprep.subr.mxu0 0.0
  %155 = vmatpush1.xpose.msra.mxu0 %v117
  %156 = vmatprep.subr.mxu0 0.0
  %157 = vmatpush1.xpose.msra.mxu0 %v120
  %158 = vmatprep.subr.mxu0 0.0
  %159 = vmatpush1.xpose.msra.mxu0 %v123
  %160 = vmatprep.subr.mxu0 0.0
  %161 = vmatpush1.xpose.msra.mxu0 %v126
  %162 = vmatprep.subr.mxu0 0.0
  %163 = vmatpush1.xpose.msra.mxu0 %v129
  %164 = vmatprep.subr.mxu0 0.0
  %165 = vmatpush1.xpose.msra.mxu0 %v132
  %166 = vmatprep.subr.mxu0 0.0
  %167 = vmatpush1.xpose.msra.mxu0 0.0
  %168 = vmatprep.subr.mxu0 0.0
  %169 = vmatpush1.xpose.msra.mxu0 0.0
  %170 = vmatprep.subr.mxu0 0.0
  %171 = vmatpush1.xpose.msra.mxu0 0.0
  %172 = vmatprep.subr.mxu0 0.0
  %173 = vmatpush1.xpose.msra.mxu0 0.0
  %174 = vmatprep.subr.mxu0 0.0
  %175 = vmatpush1.xpose.msra.mxu0 0.0
  %176 = vmatprep.subr.mxu0 0.0
  %177 = vmatpush1.xpose.msra.mxu0 0.0
  %178 = vmatprep.subr.mxu0 0.0
  %179 = vmatpush1.xpose.msra.mxu0 0.0
  %180 = vmatprep.subr.mxu0 0.0
  %181 = vmatpush1.xpose.msra.mxu0 0.0
  %182 = vmatprep.subr.mxu0 0.0
  %183 = vmatpush1.xpose.msra.mxu0 0.0
  %184 = vmatprep.subr.mxu0 0.0
  %185 = vmatpush1.xpose.msra.mxu0 0.0
  %186 = vmatprep.subr.mxu0 0.0
  %187 = vmatpush1.xpose.msra.mxu0 0.0
  %188 = vmatprep.subr.mxu0 0.0
  %189 = vmatpush1.xpose.msra.mxu0 0.0
  %190 = vmatprep.subr.mxu0 0.0
  %191 = vmatpush1.xpose.msra.mxu0 0.0
  %192 = vmatprep.subr.mxu0 0.0
  %193 = vmatpush1.xpose.msra.mxu0 0.0
  %194 = vmatprep.subr.mxu0 0.0
  %195 = vmatpush1.xpose.msra.mxu0 0.0
  %196 = vmatprep.subr.mxu0 0.0
  %197 = vmatpush1.xpose.msra.mxu0 0.0
  %198 = vmatprep.mubr.f32.mxu0 0.0
  %199 = vmatmul.mubr.f32.gmra.mrb[0].mxu0 %v75
  %v200 = vpop.f32.mrb[0].mxu0
  %v201 = vadd.f32 0.0, %v200
  %v202 = vpop.f32.mrb[0].mxu0
  %203 = vmatprep.mubr.f32.mxu0 0.0
  %204 = vmatmul.mubr.f32.gmra.mrb[0].mxu0 %v78
  %v205 = vpop.f32.mrb[0].mxu0
  %v206 = vadd.f32 0.0, %v205
  %v207 = vpop.f32.mrb[0].mxu0
  %208 = vmatprep.mubr.f32.mxu0 0.0
  %209 = vmatmul.mubr.f32.gmra.mrb[0].mxu0 %v81
  %v210 = vpop.f32.mrb[0].mxu0
  %v211 = vadd.f32 0.0, %v210
  %v212 = vpop.f32.mrb[0].mxu0
  %213 = vmatprep.mubr.f32.mxu0 0.0
  %214 = vmatmul.mubr.f32.gmra.mrb[0].mxu0 %v84
  %v215 = vpop.f32.mrb[0].mxu0
  %v216 = vadd.f32 0.0, %v215
  %v217 = vpop.f32.mrb[0].mxu0
  %218 = vdwg.mxu0
  %vm219 = vcmask 15360
  %v221 = vsel %vm219, %v33, 0
  %v224 = vsel %vm219, %v34, 0
  %v227 = vsel %vm219, %v35, 0
  %v230 = vsel %vm219, %v36, 0
  %v233 = vsel %vm219, %v37, 0
  %v236 = vsel %vm219, %v38, 0
  %v239 = vsel %vm219, %v39, 0
  %v242 = vsel %vm219, %v40, 0
  %v245 = vsel %vm219, %v41, 0
  %v248 = vsel %vm219, %v42, 0
  %v251 = vsel %vm219, %v43, 0
  %v254 = vsel %vm219, %v44, 0
  %v257 = vsel %vm219, %v45, 0
  %v260 = vsel %vm219, %v46, 0
  %v263 = vsel %vm219, %v47, 0
  %v266 = vsel %vm219, %v48, 0
  %v269 = vsel %vm219, %v49, 0
  %v272 = vsel %vm219, %v50, 0
  %v275 = vsel %vm219, %v51, 0
  %v278 = vsel %vm219, %v52, 0
  %280 = vmatprep.subr.mxu0 0.0
  %281 = vmatpush1.xpose.msra.mxu0 %v233
  %282 = vmatprep.subr.mxu0 0.0
  %283 = vmatpush1.xpose.msra.mxu0 %v236
  %284 = vmatprep.subr.mxu0 0.0
  %285 = vmatpush1.xpose.msra.mxu0 %v239
  %286 = vmatprep.subr.mxu0 0.0
  %287 = vmatpush1.xpose.msra.mxu0 %v242
  %288 = vmatprep.subr.mxu0 0.0
  %289 = vmatpush1.xpose.msra.mxu0 %v245
  %290 = vmatprep.subr.mxu0 0.0
  %291 = vmatpush1.xpose.msra.mxu0 %v248
  %292 = vmatprep.subr.mxu0 0.0
  %293 = vmatpush1.xpose.msra.mxu0 %v251
  %294 = vmatprep.subr.mxu0 0.0
  %295 = vmatpush1.xpose.msra.mxu0 %v254
  %296 = vmatprep.subr.mxu0 0.0
  %297 = vmatpush1.xpose.msra.mxu0 %v257
  %298 = vmatprep.subr.mxu0 0.0
  %299 = vmatpush1.xpose.msra.mxu0 %v260
  %300 = vmatprep.subr.mxu0 0.0
  %301 = vmatpush1.xpose.msra.mxu0 %v263
  %302 = vmatprep.subr.mxu0 0.0
  %303 = vmatpush1.xpose.msra.mxu0 %v266
  %304 = vmatprep.subr.mxu0 0.0
  %305 = vmatpush1.xpose.msra.mxu0 %v269
  %306 = vmatprep.subr.mxu0 0.0
  %307 = vmatpush1.xpose.msra.mxu0 %v272
  %308 = vmatprep.subr.mxu0 0.0
  %309 = vmatpush1.xpose.msra.mxu0 %v275
  %310 = vmatprep.subr.mxu0 0.0
  %311 = vmatpush1.xpose.msra.mxu0 %v278
  %312 = vmatprep.subr.mxu0 0.0
  %313 = vmatpush1.xpose.msra.mxu0 0.0
  %314 = vmatprep.subr.mxu0 0.0
  %315 = vmatpush1.xpose.msra.mxu0 0.0
  %316 = vmatprep.subr.mxu0 0.0
  %317 = vmatpush1.xpose.msra.mxu0 0.0
  %318 = vmatprep.subr.mxu0 0.0
  %319 = vmatpush1.xpose.msra.mxu0 0.0
  %320 = vmatprep.subr.mxu0 0.0
  %321 = vmatpush1.xpose.msra.mxu0 0.0
  %322 = vmatprep.subr.mxu0 0.0
  %323 = vmatpush1.xpose.msra.mxu0 0.0
  %324 = vmatprep.subr.mxu0 0.0
  %325 = vmatpush1.xpose.msra.mxu0 0.0
  %326 = vmatprep.subr.mxu0 0.0
  %327 = vmatpush1.xpose.msra.mxu0 0.0
  %328 = vmatprep.subr.mxu0 0.0
  %329 = vmatpush1.xpose.msra.mxu0 0.0
  %330 = vmatprep.subr.mxu0 0.0
  %331 = vmatpush1.xpose.msra.mxu0 0.0
  %332 = vmatprep.subr.mxu0 0.0
  %333 = vmatpush1.xpose.msra.mxu0 0.0
  %334 = vmatprep.subr.mxu0 0.0
  %335 = vmatpush1.xpose.msra.mxu0 0.0
  %336 = vmatprep.subr.mxu0 0.0
  %337 = vmatpush1.xpose.msra.mxu0 0.0
  %338 = vmatprep.subr.mxu0 0.0
  %339 = vmatpush1.xpose.msra.mxu0 0.0
  %340 = vmatprep.subr.mxu0 0.0
  %341 = vmatpush1.xpose.msra.mxu0 0.0
  %342 = vmatprep.subr.mxu0 0.0
  %343 = vmatpush1.xpose.msra.mxu0 0.0
  %344 = vmatprep.mubr.f32.mxu0 0.0
  %345 = vmatmul.mubr.f32.gmra.mrb[0].mxu0 %v221
  %v346 = vpop.f32.mrb[0].mxu0
  %v347 = vadd.f32 %v201, %v346
  %v348 = vpop.f32.mrb[0].mxu0
  %349 = vmatprep.mubr.f32.mxu0 0.0
  %350 = vmatmul.mubr.f32.gmra.mrb[0].mxu0 %v224
  %v351 = vpop.f32.mrb[0].mxu0
  %v352 = vadd.f32 %v206, %v351
  %v353 = vpop.f32.mrb[0].mxu0
  %354 = vmatprep.mubr.f32.mxu0 0.0
  %355 = vmatmul.mubr.f32.gmra.mrb[0].mxu0 %v227
  %v356 = vpop.f32.mrb[0].mxu0
  %v357 = vadd.f32 %v211, %v356
  %v358 = vpop.f32.mrb[0].mxu0
  %359 = vmatprep.mubr.f32.mxu0 0.0
  %360 = vmatmul.mubr.f32.gmra.mrb[0].mxu0 %v230
  %v361 = vpop.f32.mrb[0].mxu0
  %v362 = vadd.f32 %v216, %v361
  %v363 = vpop.f32.mrb[0].mxu0
  %364 = vdwg.mxu0
  %v365 = vld [vmem:[%s4] sm:$0xff]
  %v366 = vld [vmem:[%s4 + $0x8] sm:$0xff]
  %v367 = vld [vmem:[%s4 + $0x10] sm:$0xff]
  %v368 = vld [vmem:[%s4 + $0x18] sm:$0xff]
  %370 = vset.pattern.permute.xlu0 0
  %371 = vperm.xlu0 %370, %v365
  %v372 = vpop.permute.xlu0 %371
  %375 = vset.pattern.permute.xlu0 0
  %376 = vperm.xlu0 %375, %v366
  %v377 = vpop.permute.xlu0 %376
  %380 = vset.pattern.permute.xlu0 0
  %381 = vperm.xlu0 %380, %v367
  %v382 = vpop.permute.xlu0 %381
  %385 = vset.pattern.permute.xlu0 0
  %386 = vperm.xlu0 %385, %v368
  %v387 = vpop.permute.xlu0 %386
  %v389 = vadd.f32 %v347, %v372
  %v390 = vadd.f32 %v352, %v377
  %v391 = vadd.f32 %v357, %v382
  %v392 = vadd.f32 %v362, %v387
  %v393 = vmax.f32 %v389, 0.0
  %v394 = vmax.f32 %v390, 0.0
  %v395 = vmax.f32 %v391, 0.0
  %v396 = vmax.f32 %v392, 0.0
  %v397 = vld [vmem:[%s5] sm:$0xff]
  %v398 = vld [vmem:[%s5 + $0x8] sm:$0xff]
  %v399 = vld [vmem:[%s5 + $0x10] sm:$0xff]
  %v400 = vld [vmem:[%s5 + $0x18] sm:$0xff]
  %v401 = vld [vmem:[%s6] sm:$0xff]
  %v402 = vld [vmem:[%s6 + $0x8] sm:$0xff]
  %v403 = vld [vmem:[%s6 + $0x10] sm:$0xff]
  %v404 = vld [vmem:[%s6 + $0x18] sm:$0xff]
  %406 = vset.pattern.permute.xlu0 0
  %407 = vperm.xlu0 %406, %v401
  %v408 = vpop.permute.xlu0 %407
  %411 = vset.pattern.permute.xlu0 0
  %412 = vperm.xlu0 %411, %v402
  %v413 = vpop.permute.xlu0 %412
  %416 = vset.pattern.permute.xlu0 0
  %417 = vperm.xlu0 %416, %v403
  %v418 = vpop.permute.xlu0 %417
  %421 = vset.pattern.permute.xlu0 0
  %422 = vperm.xlu0 %421, %v404
  %v423 = vpop.permute.xlu0 %422
  %vm425 = vcmask 261120
  %v427 = vsel %vm425, %v397, 0
  %v430 = vsel %vm425, %v398, 0
  %v433 = vsel %vm425, %v399, 0
  %v436 = vsel %vm425, %v400, 0
  %438 = vmatprep.subr.mxu0 0.0
  %439 = vmatpush1.msra.mxu0 %v393
  %440 = vmatprep.subr.mxu0 0.0
  %441 = vmatpush1.msra.mxu0 %v394
  %442 = vmatprep.subr.mxu0 0.0
  %443 = vmatpush1.msra.mxu0 %v395
  %444 = vmatprep.subr.mxu0 0.0
  %445 = vmatpush1.msra.mxu0 %v396
  %446 = vmatprep.subr.mxu0 0.0
  %447 = vmatpush1.msra.mxu0 0.0
  %448 = vmatprep.subr.mxu0 0.0
  %449 = vmatpush1.msra.mxu0 0.0
  %450 = vmatprep.subr.mxu0 0.0
  %451 = vmatpush1.msra.mxu0 0.0
  %452 = vmatprep.subr.mxu0 0.0
  %453 = vmatpush1.msra.mxu0 0.0
  %454 = vmatprep.subr.mxu0 0.0
  %455 = vmatpush1.msra.mxu0 0.0
  %456 = vmatprep.subr.mxu0 0.0
  %457 = vmatpush1.msra.mxu0 0.0
  %458 = vmatprep.subr.mxu0 0.0
  %459 = vmatpush1.msra.mxu0 0.0
  %460 = vmatprep.subr.mxu0 0.0
  %461 = vmatpush1.msra.mxu0 0.0
  %462 = vmatprep.subr.mxu0 0.0
  %463 = vmatpush1.msra.mxu0 0.0
  %464 = vmatprep.subr.mxu0 0.0
  %465 = vmatpush1.msra.mxu0 0.0
  %466 = vmatprep.subr.mxu0 0.0
  %467 = vmatpush1.msra.mxu0 0.0
  %468 = vmatprep.subr.mxu0 0.0
  %469 = vmatpush1.msra.mxu0 0.0
  %470 = vmatprep.subr.mxu0 0.0
  %471 = vmatpush1.msra.mxu0 0.0
  %472 = vmatprep.subr.mxu0 0.0
  %473 = vmatpush1.msra.mxu0 0.0
  %474 = vmatprep.subr.mxu0 0.0
  %475 = vmatpush1.msra.mxu0 0.0
  %476 = vmatprep.subr.mxu0 0.0
  %477 = vmatpush1.msra.mxu0 0.0
  %478 = vmatprep.subr.mxu0 0.0
  %479 = vmatpush1.msra.mxu0 0.0
  %480 = vmatprep.subr.mxu0 0.0
  %481 = vmatpush1.msra.mxu0 0.0
  %482 = vmatprep.subr.mxu0 0.0
  %483 = vmatpush1.msra.mxu0 0.0
  %484 = vmatprep.subr.mxu0 0.0
  %485 = vmatpush1.msra.mxu0 0.0
  %486 = vmatprep.subr.mxu0 0.0
  %487 = vmatpush1.msra.mxu0 0.0
  %488 = vmatprep.subr.mxu0 0.0
  %489 = vmatpush1.msra.mxu0 0.0
  %490 = vmatprep.subr.mxu0 0.0
  %491 = vmatpush1.msra.mxu0 0.0
  %492 = vmatprep.subr.mxu0 0.0
  %493 = vmatpush1.msra.mxu0 0.0
  %494 = vmatprep.subr.mxu0 0.0
  %495 = vmatpush1.msra.mxu0 0.0
  %496 = vmatprep.subr.mxu0 0.0
  %497 = vmatpush1.msra.mxu0 0.0
  %498 = vmatprep.subr.mxu0 0.0
  %499 = vmatpush1.msra.mxu0 0.0
  %500 = vmatprep.subr.mxu0 0.0
  %501 = vmatpush1.msra.mxu0 0.0
  %502 = vmatprep.mubr.f32.mxu0 0.0
  %503 = vmatmul.mubr.f32.gmra.mrb[0].mxu0 %v427
  %v504 = vpop.f32.mrb[0].mxu0
  %v505 = vadd.f32 %v408, %v504
  %v506 = vpop.f32.mrb[0].mxu0
  %507 = vmatprep.mubr.f32.mxu0 0.0
  %508 = vmatmul.mubr.f32.gmra.mrb[0].mxu0 %v430
  %v509 = vpop.f32.mrb[0].mxu0
  %v510 = vadd.f32 %v413, %v509
  %v511 = vpop.f32.mrb[0].mxu0
  %512 = vmatprep.mubr.f32.mxu0 0.0
  %513 = vmatmul.mubr.f32.gmra.mrb[0].mxu0 %v433
  %v514 = vpop.f32.mrb[0].mxu0
  %v515 = vadd.f32 %v418, %v514
  %v516 = vpop.f32.mrb[0].mxu0
  %517 = vmatprep.mubr.f32.mxu0 0.0
  %518 = vmatmul.mubr.f32.gmra.mrb[0].mxu0 %v436
  %v519 = vpop.f32.mrb[0].mxu0
  %v520 = vadd.f32 %v423, %v519
  %v521 = vpop.f32.mrb[0].mxu0
  %522 = vdwg.mxu0
  %v523 = vmax.f32 %v505, 0.0
  %v524 = vmax.f32 %v510, 0.0
  %v525 = vmax.f32 %v515, 0.0
  %v526 = vmax.f32 %v520, 0.0
  %v527 = vld [vmem:[%s7] sm:$0xff]
  %v528 = vld [vmem:[%s7 + $0x8] sm:$0xff]
  %v529 = vld [vmem:[%s7 + $0x10] sm:$0xff]
  %v530 = vld [vmem:[%s7 + $0x18] sm:$0xff]
  %532 = vset.pattern.permute.xlu0 0
  %533 = vperm.xlu0 %532, %v527
  %v534 = vpop.permute.xlu0 %533
  %537 = vset.pattern.permute.xlu0 0
  %538 = vperm.xlu0 %537, %v528
  %v539 = vpop.permute.xlu0 %538
  %542 = vset.pattern.permute.xlu0 0
  %543 = vperm.xlu0 %542, %v529
  %v544 = vpop.permute.xlu0 %543
  %547 = vset.pattern.permute.xlu0 0
  %548 = vperm.xlu0 %547, %v530
  %v549 = vpop.permute.xlu0 %548
  %v551 = vmul.f32 %v523, %v534
  %v552 = vmul.f32 %v524, %v539
  %v553 = vmul.f32 %v525, %v544
  %v554 = vmul.f32 %v526, %v549
  %v555 = vadd.f32 %v551, %v552
  %v556 = vadd.f32 %v555, %v553
  %v557 = vadd.f32 %v556, %v554
  %v558 = vrot.slane %v557, 4
  %v559 = vadd.f32 %v557, %v558
  %v560 = vrot.slane %v559, 2
  %v561 = vadd.f32 %v559, %v560
  %v562 = vrot.slane %v561, 1
  %v563 = vadd.f32 %v561, %v562
  %s564 = sld [smem:[#allocation2]]
  %v565 = vstv %s564
  %v566 = vadd.f32 %v563, %v565
  %567 = vst [vmem:[%s9] sm:$0x1] %v566
  // Predicated region
  $region38: #{critic_forward.1} parent=0 // pred_check
    _
  $region39: #{critic_forward.1} parent=0 // pred_check_branch
    %569 = sbr.rel (0) target = $region41
  $region40: #{critic_forward.1} parent=0 // pred_region
    _
  $region41: #{critic_forward.1} parent=0 // pred_fallthru
    _
  // Predicated region
  $region42: #{critic_forward.1} parent=0 // pred_check
    _
  $region43: #{critic_forward.1} parent=0 // pred_check_branch
    %571 = sbr.rel (0) target = $region45
  $region44: #{critic_forward.1} parent=0 // pred_region
    _
  $region45: #{critic_forward.1} parent=0 // pred_fallthru
    _

</llo_original>
